<compile_context>
chip_gen: v7x
topology: tpu7x:2x2x1
jax: 0.10.0
libtpu: 0.0.40
codegen_flags: <defaults>
</compile_context>

<pallas_src>
import math

import jax
import jax.numpy as jnp
from jax.experimental import pallas as pl
from jax.experimental.pallas import tpu as pltpu


_PER_TILE_BYTES = 2 * 1024 * 1024  # per-buffer tile budget; x4 (double-buffered
                                   # in+out) stays well under every generation's
                                   # scoped VMEM default (16/32/32 MiB).


def _largest_div_128(dim, cap):
    """Largest multiple of 128 that divides `dim` and is <= cap (None if none)."""
    cap = min(dim, cap)
    best = None
    t = 128
    while t <= cap:
        if dim % t == 0:
            best = t
        t += 128
    return best


# ----------------------------------------------------------------------------
# 1) Fused PatchEmbed + LayerNorm + ESSAttn qkv projection
# ----------------------------------------------------------------------------
def embed_norm_qkv(x, gamma, beta, w_qkv, b_qkv, *, eps=1e-5):
    """(B, C, H, W) -> qkv (B, H*W, 3C).

    Equivalent to: lnqkv(LayerNorm(x.flatten(2).transpose(1, 2))).
    The relayout never materializes: LayerNorm runs over C (sublane axis) on
    the native (C, HW) tile and the qkv matmul contracts over C from that
    layout, producing the (HW, 3C) layout straight out of the MXU.
    """
    B, C, H, W = x.shape
    HW = H * W
    D = w_qkv.shape[1]  # 3*C
    x2 = x.reshape(B, C, HW)  # free row-major reshape

    itemsize = jnp.dtype(x.dtype).itemsize
    budget_elems = _PER_TILE_BYTES // itemsize

    # LayerNorm needs the full C, so only HW is tiled.
    if HW % 128 == 0:
        cap = max(128, budget_elems // max(C, 1))
        if B == 1:
            # v7x has 2 TensorCores: keep >= 2 steps on a parallel axis.
            cap = min(cap, max(128, HW // 2))
        tHW = _largest_div_128(HW, cap) or HW
    else:
        tHW = HW
    if C * tHW > 4 * budget_elems:
        # Whole-C slab too big for VMEM at this HW tile -> leave it to XLA.
        xe = jnp.transpose(x2, (0, 2, 1))
        mu = jnp.mean(xe, axis=-1, keepdims=True)
        var = jnp.mean((xe - mu) ** 2, axis=-1, keepdims=True)
        xn = (xe - mu) * jax.lax.rsqrt(var + eps) * gamma + beta
        return xn @ w_qkv + b_qkv

    g2 = gamma.reshape(C, 1).astype(jnp.float32)
    bt2 = beta.reshape(C, 1).astype(jnp.float32)
    bias2 = b_qkv.reshape(1, D).astype(jnp.float32)
    w2 = w_qkv.astype(jnp.float32)

    def kernel(x_ref, g_ref, bt_ref, w_ref, bias_ref, o_ref):
        xt = x_ref[...].astype(jnp.float32)                   # (C, tHW)
        mu = jnp.mean(xt, axis=0, keepdims=True)              # LayerNorm over C
        xc = xt - mu
        var = jnp.mean(xc * xc, axis=0, keepdims=True)
        xn = xc * jax.lax.rsqrt(var + eps) * g_ref[...] + bt_ref[...]
        # Fuse the PatchEmbed transpose into the projection: contract over C
        # (axis 0 of both operands) so the result is already (tHW, 3C).
        acc = jax.lax.dot_general(
            xn, w_ref[...],
            dimension_numbers=(((0,), (0,)), ((), ())),
            preferred_element_type=jnp.float32)
        o_ref[...] = (acc + bias_ref[...]).astype(o_ref.dtype)

    grid = (B, HW // tHW)
    cost = pl.CostEstimate(
        flops=2 * B * HW * C * D,
        transcendentals=0,
        bytes_accessed=(B * C * HW + B * HW * D + C * D + 2 * C + D) * itemsize)

    return pl.pallas_call(
        kernel,
        out_shape=jax.ShapeDtypeStruct((B, HW, D), x.dtype),
        grid=grid,
        in_specs=[
            pl.BlockSpec((None, C, tHW), lambda b, h: (b, 0, h)),
            pl.BlockSpec((C, 1), lambda b, h: (0, 0)),
            pl.BlockSpec((C, 1), lambda b, h: (0, 0)),
            pl.BlockSpec((C, D), lambda b, h: (0, 0)),
            pl.BlockSpec((1, D), lambda b, h: (0, 0)),
        ],
        out_specs=pl.BlockSpec((None, tHW, D), lambda b, h: (b, h, 0)),
        compiler_params=pltpu.CompilerParams(
            dimension_semantics=("parallel", "parallel")),
        cost_estimate=cost,
    )(x2, g2, bt2, w2, bias2)


# ----------------------------------------------------------------------------
# 2) Standalone PatchEmbed relayout (kept for paths with no following matmul)
# ----------------------------------------------------------------------------
def patch_embed_kernel(x_ref, o_ref):
    # x_ref: (tC, tHW)  ->  o_ref: (tHW, tC); small per-tile XLU transpose that
    # hides under the next tile's DMA.
    o_ref[...] = jnp.transpose(x_ref[...], (1, 0))


def patch_embed(x):
    """x: (B, C, H, W) -> (B, H*W, C); equivalent to x.flatten(2).transpose(1, 2)."""
    B, C, H, W = x.shape
    HW = H * W
    x2 = x.reshape(B, C, HW)  # free row-major reshape

    # Review fix: small / unaligned C means masked vst.msk partial stores and
    # tiny strided output DMA rows -> route to XLA instead of emitting tC < 128.
    if C % 128 != 0:
        return jnp.transpose(x2, (0, 2, 1))

    itemsize = jnp.dtype(x.dtype).itemsize
    budget_elems = _PER_TILE_BYTES // itemsize

    # Review fix: bias the tile budget toward tC (output lane width) first,
    # then size tHW from the remaining budget; everything is byte-bounded so a
    # weird shape can never blow past VMEM (guaranteed fit on v7x's 64 MiB).
    tC = _largest_div_128(C, min(1024, budget_elems))
    if tC is None:
        return jnp.transpose(x2, (0, 2, 1))

    hw_cap = max(128, budget_elems // tC)
    if B == 1 and C == tC:
        # v7x has 2 TensorCores: make sure a parallel axis has >= 2 steps.
        hw_cap = min(hw_cap, max(128, HW // 2))
    tHW = _largest_div_128(HW, hw_cap)
    if tHW is None:
        # No 128-aligned divisor of HW: take the full extent only if it still
        # fits the budget, otherwise leave the relayout to XLA.
        if tC * HW <= 2 * budget_elems:
            tHW = HW
        else:
            return jnp.transpose(x2, (0, 2, 1))

    grid = (B, HW // tHW, C // tC)
    cost = pl.CostEstimate(flops=0, transcendentals=0,
                           bytes_accessed=2 * B * HW * C * itemsize)
    # TODO(synk): if an xprof trace shows exposed output-writeback DMA, sweep
    # pipeline_mode=pl.Buffered(3) on the out_spec; on v7x with bf16, consider
    # bitcast-packing C pairs to u32 around the transpose if XLU becomes
    # co-critical at 3.2 TB/s.
    return pl.pallas_call(
        patch_embed_kernel,
        out_shape=jax.ShapeDtypeStruct((B, HW, C), x.dtype),
        grid=grid,
        in_specs=[pl.BlockSpec((None, tC, tHW), lambda b, h, c: (b, c, h))],
        out_specs=pl.BlockSpec((None, tHW, tC), lambda b, h, c: (b, h, c)),
        compiler_params=pltpu.CompilerParams(
            dimension_semantics=("parallel", "parallel", "parallel")),
        cost_estimate=cost,
    )(x2)


# ----------------------------------------------------------------------------
# ESSAttn tail (post-qkv) in plain jnp — global-over-N normalize + small CxC
# matmuls; left to XLA.
# ----------------------------------------------------------------------------
def essattn_tail(qkv, w_ln, b_ln):
    B, N, D = qkv.shape
    C = D // 3
    q, k, v = qkv[..., :C], qkv[..., C:2 * C], qkv[..., 2 * C:]
    q = q - jnp.mean(q, axis=2, keepdims=True)
    k = k - jnp.mean(k, axis=2, keepdims=True)
    q2 = q * q
    q2s = jnp.sum(q2, axis=2, keepdims=True)
    k2 = k * k
    k2s = jnp.sum(k2, axis=2, keepdims=True)
    k2 = k2 / (k2s + 1e-7)
    k2 = k2 / jnp.maximum(jnp.linalg.norm(k2, axis=-2, keepdims=True), 1e-12)
    q2 = q2 / (q2s + 1e-7)
    q2 = q2 / jnp.maximum(jnp.linalg.norm(q2, axis=-1, keepdims=True), 1e-12)
    t2 = q2 @ (jnp.swapaxes(k2, -2, -1) @ v) / math.sqrt(N)
    attn = v + t2
    return attn @ w_ln + b_ln


# TODO(synk): the remaining blockup graph (Conv2d stacks, LeakyReLU, Dropout2d,
# PixelShuffle/PixelUnshuffle, PatchUnEmbed reshape) is left to XLA; the
# PatchUnEmbed relayout can likewise be fused into the preceding `ln` matmul.


if __name__ == "__main__":
    key = jax.random.PRNGKey(0)
    ks = jax.random.split(key, 8)

    # ---- Case 1: PatchEmbed, small unaligned C (routed to the XLA fallback) ----
    B, C, H, W = 2, 4, 16, 16
    x = jax.random.normal(ks[0], (B, C, H, W), dtype=jnp.float32)
    out = jax.block_until_ready(patch_embed(x))
    ref = jnp.transpose(x.reshape(B, C, H * W), (0, 2, 1))
    assert out.shape == (B, H * W, C), out.shape
    assert out.dtype == x.dtype
    assert jnp.allclose(out, ref), "patch_embed mismatch (small-C fallback)"

    # ---- Case 2: PatchEmbed, lane-dense tiled Pallas path (C multiple of 128) ----
    B2, C2, H2, W2 = 1, 256, 32, 32
    x2 = jax.random.normal(ks[1], (B2, C2, H2, W2), dtype=jnp.float32)
    out2 = jax.block_until_ready(patch_embed(x2))
    ref2 = jnp.transpose(x2.reshape(B2, C2, H2 * W2), (0, 2, 1))
    assert out2.shape == (B2, H2 * W2, C2), out2.shape
    assert jnp.allclose(out2, ref2), "patch_embed mismatch (tiled case)"

    # ---- Case 3: fused PatchEmbed + LayerNorm + qkv projection, then ESSAttn ----
    dim = 32
    Bf, Hf, Wf = 2, 16, 16
    xf = jax.random.normal(ks[2], (Bf, dim, Hf, Wf), dtype=jnp.float32)
    gamma = 1.0 + 0.1 * jax.random.normal(ks[3], (dim,), dtype=jnp.float32)
    beta = 0.1 * jax.random.normal(ks[4], (dim,), dtype=jnp.float32)
    w_qkv = 0.1 * jax.random.normal(ks[5], (dim, 3 * dim), dtype=jnp.float32)
    b_qkv = 0.1 * jax.random.normal(ks[6], (3 * dim,), dtype=jnp.float32)
    w_ln = 0.1 * jax.random.normal(ks[7], (dim, dim), dtype=jnp.float32)
    b_ln = jnp.zeros((dim,), jnp.float32)

    qkv = jax.block_until_ready(embed_norm_qkv(xf, gamma, beta, w_qkv, b_qkv))
    attn = essattn_tail(qkv, w_ln, b_ln)

    # Torch-faithful reference path in plain jnp.
    xe = jnp.transpose(xf.reshape(Bf, dim, Hf * Wf), (0, 2, 1))
    mu = jnp.mean(xe, axis=-1, keepdims=True)
    var = jnp.mean((xe - mu) ** 2, axis=-1, keepdims=True)
    xn = (xe - mu) / jnp.sqrt(var + 1e-5) * gamma + beta
    qkv_ref = xn @ w_qkv + b_qkv
    attn_ref = essattn_tail(qkv_ref, w_ln, b_ln)

    assert qkv.shape == (Bf, Hf * Wf, 3 * dim), qkv.shape
    assert jnp.allclose(qkv, qkv_ref, rtol=5e-2, atol=5e-2), "fused qkv mismatch"
    assert jnp.allclose(attn, attn_ref, rtol=5e-2, atol=5e-2), "ESSAttn mismatch"

    print("KERNEL_OK")
</pallas_src>

<mosaic_0001>
module attributes {stable_mosaic.version = 11 : i64} {
  func.func @patch_embed_kernel(%arg0: i32, %arg1: i32, %arg2: i32, %arg3: memref<1x256x512xf32, #tpu.memory_space<vmem>>, %arg4: memref<1x512x256xf32, #tpu.memory_space<vmem>>) attributes {dimension_semantics = [#tpu.dimension_semantics<parallel>, #tpu.dimension_semantics<parallel>, #tpu.dimension_semantics<parallel>], iteration_bounds = array<i64: 1, 2, 1>, scalar_prefetch = 0 : i64, scratch_operands = 0 : i64, tpu.core_type = #tpu.core_type<tc>, window_params = [{transform_indices = @transform_0, window_bounds = array<i64: 1, 256, 512>}, {transform_indices = @transform_1, window_bounds = array<i64: 1, 512, 256>}]} {
    %c0 = arith.constant 0 : index
    %c0_0 = arith.constant 0 : index
    %c0_1 = arith.constant 0 : index
    %0 = vector.load %arg3[%c0, %c0_0, %c0_1] : memref<1x256x512xf32, #tpu.memory_space<vmem>>, vector<1x256x512xf32>
    %1 = vector.shape_cast %0 : vector<1x256x512xf32> to vector<256x512xf32>
    %2 = tpu.transpose %1, [1, 0] : vector<256x512xf32> -> vector<512x256xf32>
    %c0_2 = arith.constant 0 : index
    %c0_3 = arith.constant 0 : index
    %c0_4 = arith.constant 0 : index
    %3 = vector.load %arg4[%c0_2, %c0_3, %c0_4] : memref<1x512x256xf32, #tpu.memory_space<vmem>>, vector<1x512x256xf32>
    %4 = vector.shape_cast %3 : vector<1x512x256xf32> to vector<512x256xf32>
    %5 = vector.shape_cast %2 : vector<512x256xf32> to vector<1x512x256xf32>
    tpu.vector_store %arg4[%c0_2, %c0_3, %c0_4], %5 {strides = array<i32>} : memref<1x512x256xf32, #tpu.memory_space<vmem>>, vector<1x512x256xf32>,
    return
  }
  func.func @transform_0(%arg0: i32, %arg1: i32, %arg2: i32) -> (i32, i32, i32) {
    %c0_i32 = arith.constant 0 : i32
    return %arg0, %arg2, %arg1 : i32, i32, i32
  }
  func.func @transform_1(%arg0: i32, %arg1: i32, %arg2: i32) -> (i32, i32, i32) {
    %c0_i32 = arith.constant 0 : i32
    return %arg0, %arg1, %arg2 : i32, i32, i32
  }
}

</mosaic_0001>

<llo_original>
// kernel: tpu_custom_call.1
$region0: #{tpu_custom_call.1}
  #allocation0 [shape = 'u32[]', space=smem, size = 0x4, offset = 0x4, fixed_abs, tag = 'smem constant byte address 0x4 - core index']
  #allocation1 [shape = 'u32[144,128]{1,0:T(1,128)}', space=vmem, size = 0x12000, scoped, tag = 'internal scratch']
  %s0 = inlined_call_operand.hbm [shape: f32[1,256,1024], index: 0, kind: input, shape index: {}]
  %s1 = inlined_call_operand.hbm [shape: f32[1,1024,256], index: 1, kind: output, shape index: {}]
  %s2 = sld [smem:[#allocation0]]
  $region41: #{tpu_custom_call.1} parent=0
    _
  %s4 = ssub.s32 1, %s2
  %s5 = scalar_select 0, %s4, %s2
  $region1: #{tpu_custom_call.1} parent=0
    #allocation2 [shape = 'u8[1048576]{0}', space=vmem, size = 0x100000, scoped, tag = 'input window, operand 0']
    #allocation3 [shape = 's32[2]{0}', space=sflag, size = 0x8, scoped, tag = 'scoped memory for tpu_custom_call.1']
    #allocation4 [shape = 's32[2]{0}', space=sflag, size = 0x8, scoped, tag = 'scoped memory for tpu_custom_call.1']
    #allocation5 [shape = 'u8[1048576]{0}', space=vmem, size = 0x100000, scoped, tag = 'output window, operand 0']
    %6 = vsyncpa [#allocation3], 0
    %s7 = scalar_lea.sflag [#allocation3], 1
    %8 = vsyncpa %s7, 0
    %9 = vsyncpa [#allocation4], 0
    %s10 = scalar_lea.sflag [#allocation4], 1
    %11 = vsyncpa %s10, 0
    loop: start=0, step=1, limit=4
    $region2: #{tpu_custom_call.1} parent=1 // loop_pre_header
      _
    $region3: #{tpu_custom_call.1} parent=1 // loop_header
      %s13 = sphi 0, %s17
      %p14 = scmp.ge.s32.totalorder %s13, 4
      %s20 = sphi 0, %s39
      %s21 = sphi 0, %s35
      %s22 = sphi 0, %s31
      %s23 = sphi 0, %s20
      %s24 = sphi 0, %s21
      %s25 = sphi 0, %s22
      %s26 = sphi 0, %s23
      %s27 = sphi 0, %s24
      %s28 = sphi 0, %s25
      %s46 = sphi 0, %s48
      %s49 = sphi 0, %s46
      %s50 = sphi 0, %s49
      %s66 = sphi 0, %s50
      %s76 = sphi 0, %s78
      %s79 = sphi 0, %s76
      %s80 = sphi 0, %s79
      %s96 = sphi 0, %s80
    $region4: #{tpu_custom_call.1} parent=1 // loop_header_branch
      %16 = sbr.rel (%p14) target = $region8
    $region5: #{tpu_custom_call.1} parent=1 // loop_body
      %s18 = ssub.s32 %s13, 1
      %s19 = ssub.s32 %s13, 2
      %s29 = sadd.s32 1, %s22
      %p30 = scmp.ge.s32.totalorder %s29, 1
      %s31 = scalar_select %p30, 0, %s29
      %s32 = sadd.s32 1, %s21
      %s33 = scalar_select %p30, %s32, %s21
      %p34 = scmp.ge.s32.totalorder %s33, 2
      %s35 = scalar_select %p34, 0, %s33
      %s36 = sadd.s32 1, %s20
      %s37 = scalar_select %p34, %s36, %s20
      %p38 = scmp.ge.s32.totalorder %s37, 1
      %s39 = scalar_select %p38, 0, %s37
      %s40 = ssub.s32 %s20, %s39
      %s41 = ssub.s32 %s22, %s31
      %s42 = sor.u32 %s40, %s41
      %s43 = ssub.s32 %s21, %s35
      %s44 = sor.u32 %s42, %s43
      %p45 = scmp.eq.s32.totalorder %s44, 0
      %s47 = sadd.s32 %s46, 1
      %s48 = scalar_select %p45, %s46, %s47
      %p51 = pneg %p45
      %p52 = scmp.eq.s32.totalorder %s13, 1
      %p53 = por %p51, %p52
      %p54 = scmp.ne.s32.totalorder %s46, %s49
      %p55 = scmp.eq.s32.totalorder %s13, 0
      %p56 = por %p54, %p55
      %p57 = scmp.ne.s32.totalorder %s46, %s49
      %p58 = scmp.eq.s32.totalorder %s18, 1
      %p59 = por %p57, %p58
      %p60 = scmp.ne.s32.totalorder %s49, %s50
      %p61 = scmp.eq.s32.totalorder %s18, 0
      %p62 = por %p60, %p61
      %p63 = scmp.ne.s32.totalorder %s49, %s50
      %p64 = scmp.eq.s32.totalorder %s19, 1
      %p65 = por %p63, %p64
      %p67 = scmp.ne.s32.totalorder %s50, %s66
      %p68 = scmp.eq.s32.totalorder %s19, 0
      %p69 = por %p67, %p68
      %s70 = ssub.s32 %s20, %s39
      %s71 = ssub.s32 %s21, %s35
      %s72 = sor.u32 %s70, %s71
      %s73 = ssub.s32 %s22, %s31
      %s74 = sor.u32 %s72, %s73
      %p75 = scmp.eq.s32.totalorder %s74, 0
      %s77 = sadd.s32 %s76, 1
      %s78 = scalar_select %p75, %s76, %s77
      %p81 = pneg %p75
      %p82 = scmp.eq.s32.totalorder %s13, 1
      %p83 = por %p81, %p82
      %p84 = scmp.ne.s32.totalorder %s76, %s79
      %p85 = scmp.eq.s32.totalorder %s13, 0
      %p86 = por %p84, %p85
      %p87 = scmp.ne.s32.totalorder %s76, %s79
      %p88 = scmp.eq.s32.totalorder %s18, 1
      %p89 = por %p87, %p88
      %p90 = scmp.ne.s32.totalorder %s79, %s80
      %p91 = scmp.eq.s32.totalorder %s18, 0
      %p92 = por %p90, %p91
      %p93 = scmp.ne.s32.totalorder %s79, %s80
      %p94 = scmp.eq.s32.totalorder %s19, 1
      %p95 = por %p93, %p94
      %p97 = scmp.ne.s32.totalorder %s80, %s96
      %p98 = scmp.eq.s32.totalorder %s19, 0
      %p99 = por %p97, %p98
      %p100 = scmp.le.s32.totalorder 1, %s13
      %p101 = scmp.lt.s32.totalorder %s13, 3
      %p102 = pnand %p100, %p101
      %p103 = pneg %p102
      // Predicated region
      $region9: #{tpu_custom_call.1} parent=5 // pred_check
        _
      $region10: #{tpu_custom_call.1} parent=5 // pred_check_branch
        %105 = sbr.rel (%p102) target = $region12
      $region11: #{tpu_custom_call.1} parent=5 // pred_region
        %s106 = ssub.s32 %s13, 1
      $region12: #{tpu_custom_call.1} parent=5 // pred_fallthru
        _
      %p107 = scmp.lt.s32.totalorder %s13, 2
      // Predicated region
      $region13: #{tpu_custom_call.1} parent=5 // pred_check
        %p108 = pneg %p107
      $region14: #{tpu_custom_call.1} parent=5 // pred_check_branch
        %110 = sbr.rel (%p108) target = $region16
      $region15: #{tpu_custom_call.1} parent=5 // pred_region
        // Predicated region
        $region17: #{tpu_custom_call.1} parent=15 // pred_check
          %p111 = pneg %p56
        $region18: #{tpu_custom_call.1} parent=15 // pred_check_branch
          %113 = sbr.rel (%p111) target = $region20
        $region19: #{tpu_custom_call.1} parent=15 // pred_region
          %s114 = sand.u32 %s46, 1
          %s115 = scalar_lea.sflag [#allocation3], %s114
          %s116 = sand.u32 %s46, 1
          %s117 = smul.addr %s116, 1024
          %s118 = scalar_lea.vmem [#allocation2], %s117
          %s119 = smul.u32 32, %s22
          %s120 = smul.u32 4, %s21
          %s122 = ssub.s32 16384, 16384
          %123 = vsyncadd %s115, %s122
          %s124 = smul.addr %s119, 8
          %s125 = sadd.s32 %s120, %s124
          %s126 = smul.addr %s20, 256
          %s127 = sadd.s32 %s125, %s126
          %s128 = smul.addr %s127, 128
          %s129 = scalar_lea.hbm %s0, %s128
          %s130 = sshll.u32 %s118, 4
          %s131 = int_to_ptr.vmem [resolvable:$true] %s130
          %136 = dma.hbm_to_vmem [thread:$0]  %s129, 16384, %s131, %s115, 1024, 512, 32
        $region20: #{tpu_custom_call.1} parent=15 // pred_fallthru
          _
      $region16: #{tpu_custom_call.1} parent=5 // pred_fallthru
        _
      %p137 = scmp.le.s32.totalorder 1, %s13
      %p138 = scmp.lt.s32.totalorder %s13, 3
      %p139 = pnand %p137, %p138
      %p140 = pneg %p139
      // Predicated region
      $region21: #{tpu_custom_call.1} parent=5 // pred_check
        _
      $region22: #{tpu_custom_call.1} parent=5 // pred_check_branch
        %142 = sbr.rel (%p139) target = $region24
      $region23: #{tpu_custom_call.1} parent=5 // pred_region
        %s143 = ssub.s32 %s13, 1
        %s144 = sand.u32 %s49, 1
        %s145 = scalar_lea.sflag [#allocation3], %s144
        %s146 = sand.u32 %s49, 1
        %s147 = smul.addr %s146, 1024
        %s148 = scalar_lea.vmem [#allocation2], %s147
        // Predicated region
        $region25: #{tpu_custom_call.1} parent=23 // pred_check
          %p149 = pneg %p62
        $region26: #{tpu_custom_call.1} parent=23 // pred_check_branch
          %151 = sbr.rel (%p149) target = $region28
        $region27: #{tpu_custom_call.1} parent=23 // pred_region
          %152 = dma.done %s145, 16384
        $region28: #{tpu_custom_call.1} parent=23 // pred_fallthru
          _
        %s153 = sand.u32 %s49, 1
        %s154 = scalar_lea.sflag [#allocation3], %s153
        %s155 = sand.u32 %s49, 1
        %s156 = smul.addr %s155, 1024
        %s157 = scalar_lea.vmem [#allocation2], %s156
        %p158 = pneg %p62
        %p159 = pneg %p59
        %p160 = pneg %p92
        %p161 = pneg %p89
        %s162 = sand.u32 %s79, 1
        %s163 = scalar_lea.sflag [#allocation4], %s162
        %s164 = sand.u32 %s79, 1
        %s165 = smul.addr %s164, 1024
        %s166 = scalar_lea.vmem [#allocation5], %s165
        %s167 = smul.u32 32, %s25
        %s168 = smul.u32 4, %s24
        %s169 = smul.u32 64, %s24
        %s170 = smul.u32 2, %s25
        %v171 = vld [vmem:[%s148] sm:$0xff]
        %v172 = vld [vmem:[%s148 + $0x8] sm:$0xff]
        %v173 = vld [vmem:[%s148 + $0x10] sm:$0xff]
        %v174 = vld [vmem:[%s148 + $0x18] sm:$0xff]
        %v175 = vld [vmem:[%s148 + $0x20] sm:$0xff]
        %v176 = vld [vmem:[%s148 + $0x28] sm:$0xff]
        %v177 = vld [vmem:[%s148 + $0x30] sm:$0xff]
        %v178 = vld [vmem:[%s148 + $0x38] sm:$0xff]
        %v179 = vld [vmem:[%s148 + $0x40] sm:$0xff]
        %v180 = vld [vmem:[%s148 + $0x48] sm:$0xff]
        %v181 = vld [vmem:[%s148 + $0x50] sm:$0xff]
        %v182 = vld [vmem:[%s148 + $0x58] sm:$0xff]
        %v183 = vld [vmem:[%s148 + $0x60] sm:$0xff]
        %v184 = vld [vmem:[%s148 + $0x68] sm:$0xff]
        %v185 = vld [vmem:[%s148 + $0x70] sm:$0xff]
        %v186 = vld [vmem:[%s148 + $0x78] sm:$0xff]
        %v187 = vld [vmem:[%s148 + $0x80] sm:$0xff]
        %v188 = vld [vmem:[%s148 + $0x88] sm:$0xff]
        %v189 = vld [vmem:[%s148 + $0x90] sm:$0xff]
        %v190 = vld [vmem:[%s148 + $0x98] sm:$0xff]
        %v191 = vld [vmem:[%s148 + $0xa0] sm:$0xff]
        %v192 = vld [vmem:[%s148 + $0xa8] sm:$0xff]
        %v193 = vld [vmem:[%s148 + $0xb0] sm:$0xff]
        %v194 = vld [vmem:[%s148 + $0xb8] sm:$0xff]
        %v195 = vld [vmem:[%s148 + $0xc0] sm:$0xff]
        %v196 = vld [vmem:[%s148 + $0xc8] sm:$0xff]
        %v197 = vld [vmem:[%s148 + $0xd0] sm:$0xff]
        %v198 = vld [vmem:[%s148 + $0xd8] sm:$0xff]
        %v199 = vld [vmem:[%s148 + $0xe0] sm:$0xff]
        %v200 = vld [vmem:[%s148 + $0xe8] sm:$0xff]
        %v201 = vld [vmem:[%s148 + $0xf0] sm:$0xff]
        %v202 = vld [vmem:[%s148 + $0xf8] sm:$0xff]
        %v203 = vld [vmem:[%s148 + $0x100] sm:$0xff]
        %v204 = vld [vmem:[%s148 + $0x108] sm:$0xff]
        %v205 = vld [vmem:[%s148 + $0x110] sm:$0xff]
        %v206 = vld [vmem:[%s148 + $0x118] sm:$0xff]
        %v207 = vld [vmem:[%s148 + $0x120] sm:$0xff]
        %v208 = vld [vmem:[%s148 + $0x128] sm:$0xff]
        %v209 = vld [vmem:[%s148 + $0x130] sm:$0xff]
        %v210 = vld [vmem:[%s148 + $0x138] sm:$0xff]
        %v211 = vld [vmem:[%s148 + $0x140] sm:$0xff]
        %v212 = vld [vmem:[%s148 + $0x148] sm:$0xff]
        %v213 = vld [vmem:[%s148 + $0x150] sm:$0xff]
        %v214 = vld [vmem:[%s148 + $0x158] sm:$0xff]
        %v215 = vld [vmem:[%s148 + $0x160] sm:$0xff]
        %v216 = vld [vmem:[%s148 + $0x168] sm:$0xff]
        %v217 = vld [vmem:[%s148 + $0x170] sm:$0xff]
        %v218 = vld [vmem:[%s148 + $0x178] sm:$0xff]
        %v219 = vld [vmem:[%s148 + $0x180] sm:$0xff]
        %v220 = vld [vmem:[%s148 + $0x188] sm:$0xff]
        %v221 = vld [vmem:[%s148 + $0x190] sm:$0xff]
        %v222 = vld [vmem:[%s148 + $0x198] sm:$0xff]
        %v223 = vld [vmem:[%s148 + $0x1a0] sm:$0xff]
        %v224 = vld [vmem:[%s148 + $0x1a8] sm:$0xff]
        %v225 = vld [vmem:[%s148 + $0x1b0] sm:$0xff]
        %v226 = vld [vmem:[%s148 + $0x1b8] sm:$0xff]
        %v227 = vld [vmem:[%s148 + $0x1c0] sm:$0xff]
        %v228 = vld [vmem:[%s148 + $0x1c8] sm:$0xff]
        %v229 = vld [vmem:[%s148 + $0x1d0] sm:$0xff]
        %v230 = vld [vmem:[%s148 + $0x1d8] sm:$0xff]
        %v231 = vld [vmem:[%s148 + $0x1e0] sm:$0xff]
        %v232 = vld [vmem:[%s148 + $0x1e8] sm:$0xff]
        %v233 = vld [vmem:[%s148 + $0x1f0] sm:$0xff]
        %v234 = vld [vmem:[%s148 + $0x1f8] sm:$0xff]
        %v235 = vld [vmem:[%s148 + $0x200] sm:$0xff]
        %v236 = vld [vmem:[%s148 + $0x208] sm:$0xff]
        %v237 = vld [vmem:[%s148 + $0x210] sm:$0xff]
        %v238 = vld [vmem:[%s148 + $0x218] sm:$0xff]
        %v239 = vld [vmem:[%s148 + $0x220] sm:$0xff]
        %v240 = vld [vmem:[%s148 + $0x228] sm:$0xff]
        %v241 = vld [vmem:[%s148 + $0x230] sm:$0xff]
        %v242 = vld [vmem:[%s148 + $0x238] sm:$0xff]
        %v243 = vld [vmem:[%s148 + $0x240] sm:$0xff]
        %v244 = vld [vmem:[%s148 + $0x248] sm:$0xff]
        %v245 = vld [vmem:[%s148 + $0x250] sm:$0xff]
        %v246 = vld [vmem:[%s148 + $0x258] sm:$0xff]
        %v247 = vld [vmem:[%s148 + $0x260] sm:$0xff]
        %v248 = vld [vmem:[%s148 + $0x268] sm:$0xff]
        %v249 = vld [vmem:[%s148 + $0x270] sm:$0xff]
        %v250 = vld [vmem:[%s148 + $0x278] sm:$0xff]
        %v251 = vld [vmem:[%s148 + $0x280] sm:$0xff]
        %v252 = vld [vmem:[%s148 + $0x288] sm:$0xff]
        %v253 = vld [vmem:[%s148 + $0x290] sm:$0xff]
        %v254 = vld [vmem:[%s148 + $0x298] sm:$0xff]
        %v255 = vld [vmem:[%s148 + $0x2a0] sm:$0xff]
        %v256 = vld [vmem:[%s148 + $0x2a8] sm:$0xff]
        %v257 = vld [vmem:[%s148 + $0x2b0] sm:$0xff]
        %v258 = vld [vmem:[%s148 + $0x2b8] sm:$0xff]
        %v259 = vld [vmem:[%s148 + $0x2c0] sm:$0xff]
        %v260 = vld [vmem:[%s148 + $0x2c8] sm:$0xff]
        %v261 = vld [vmem:[%s148 + $0x2d0] sm:$0xff]
        %v262 = vld [vmem:[%s148 + $0x2d8] sm:$0xff]
        %v263 = vld [vmem:[%s148 + $0x2e0] sm:$0xff]
        %v264 = vld [vmem:[%s148 + $0x2e8] sm:$0xff]
        %v265 = vld [vmem:[%s148 + $0x2f0] sm:$0xff]
        %v266 = vld [vmem:[%s148 + $0x2f8] sm:$0xff]
        %v267 = vld [vmem:[%s148 + $0x300] sm:$0xff]
        %v268 = vld [vmem:[%s148 + $0x308] sm:$0xff]
        %v269 = vld [vmem:[%s148 + $0x310] sm:$0xff]
        %v270 = vld [vmem:[%s148 + $0x318] sm:$0xff]
        %v271 = vld [vmem:[%s148 + $0x320] sm:$0xff]
        %v272 = vld [vmem:[%s148 + $0x328] sm:$0xff]
        %v273 = vld [vmem:[%s148 + $0x330] sm:$0xff]
        %v274 = vld [vmem:[%s148 + $0x338] sm:$0xff]
        %v275 = vld [vmem:[%s148 + $0x340] sm:$0xff]
        %v276 = vld [vmem:[%s148 + $0x348] sm:$0xff]
        %v277 = vld [vmem:[%s148 + $0x350] sm:$0xff]
        %v278 = vld [vmem:[%s148 + $0x358] sm:$0xff]
        %v279 = vld [vmem:[%s148 + $0x360] sm:$0xff]
        %v280 = vld [vmem:[%s148 + $0x368] sm:$0xff]
        %v281 = vld [vmem:[%s148 + $0x370] sm:$0xff]
        %v282 = vld [vmem:[%s148 + $0x378] sm:$0xff]
        %v283 = vld [vmem:[%s148 + $0x380] sm:$0xff]
        %v284 = vld [vmem:[%s148 + $0x388] sm:$0xff]
        %v285 = vld [vmem:[%s148 + $0x390] sm:$0xff]
        %v286 = vld [vmem:[%s148 + $0x398] sm:$0xff]
        %v287 = vld [vmem:[%s148 + $0x3a0] sm:$0xff]
        %v288 = vld [vmem:[%s148 + $0x3a8] sm:$0xff]
        %v289 = vld [vmem:[%s148 + $0x3b0] sm:$0xff]
        %v290 = vld [vmem:[%s148 + $0x3b8] sm:$0xff]
        %v291 = vld [vmem:[%s148 + $0x3c0] sm:$0xff]
        %v292 = vld [vmem:[%s148 + $0x3c8] sm:$0xff]
        %v293 = vld [vmem:[%s148 + $0x3d0] sm:$0xff]
        %v294 = vld [vmem:[%s148 + $0x3d8] sm:$0xff]
        %v295 = vld [vmem:[%s148 + $0x3e0] sm:$0xff]
        %v296 = vld [vmem:[%s148 + $0x3e8] sm:$0xff]
        %v297 = vld [vmem:[%s148 + $0x3f0] sm:$0xff]
        %v298 = vld [vmem:[%s148 + $0x3f8] sm:$0xff]
        %299 = vxpose.xlu0.b32.start [1/16] %v171, 128
        %300 = vxpose.xlu0.b32.cont [2/16] %v175, 128
        %301 = vxpose.xlu0.b32.cont [3/16] %v179, 128
        %302 = vxpose.xlu0.b32.cont [4/16] %v183, 128
        %303 = vxpose.xlu0.b32.cont [5/16] %v187, 128
        %304 = vxpose.xlu0.b32.cont [6/16] %v191, 128
        %305 = vxpose.xlu0.b32.cont [7/16] %v195, 128
        %306 = vxpose.xlu0.b32.cont [8/16] %v199, 128
        %307 = vxpose.xlu0.b32.cont [9/16] %v203, 128
        %308 = vxpose.xlu0.b32.cont [10/16] %v207, 128
        %309 = vxpose.xlu0.b32.cont [11/16] %v211, 128
        %310 = vxpose.xlu0.b32.cont [12/16] %v215, 128
        %311 = vxpose.xlu0.b32.cont [13/16] %v219, 128
        %312 = vxpose.xlu0.b32.cont [14/16] %v223, 128
        %313 = vxpose.xlu0.b32.cont [15/16] %v227, 128
        %314 = vxpose.xlu0.b32.end [16/16] %v231, 128
        %v315 = vpop.trf.xlu0
        %v316 = vpop.trf.xlu0
        %v317 = vpop.trf.xlu0
        %v318 = vpop.trf.xlu0
        %v319 = vpop.trf.xlu0
        %v320 = vpop.trf.xlu0
        %v321 = vpop.trf.xlu0
        %v322 = vpop.trf.xlu0
        %v323 = vpop.trf.xlu0
        %v324 = vpop.trf.xlu0
        %v325 = vpop.trf.xlu0
        %v326 = vpop.trf.xlu0
        %v327 = vpop.trf.xlu0
        %v328 = vpop.trf.xlu0
        %v329 = vpop.trf.xlu0
        %v330 = vpop.trf.xlu0
        %331 = vxpose.xlu0.b32.start [1/16] %v172, 128
        %332 = vxpose.xlu0.b32.cont [2/16] %v176, 128
        %333 = vxpose.xlu0.b32.cont [3/16] %v180, 128
        %334 = vxpose.xlu0.b32.cont [4/16] %v184, 128
        %335 = vxpose.xlu0.b32.cont [5/16] %v188, 128
        %336 = vxpose.xlu0.b32.cont [6/16] %v192, 128
        %337 = vxpose.xlu0.b32.cont [7/16] %v196, 128
        %338 = vxpose.xlu0.b32.cont [8/16] %v200, 128
        %339 = vxpose.xlu0.b32.cont [9/16] %v204, 128
        %340 = vxpose.xlu0.b32.cont [10/16] %v208, 128
        %341 = vxpose.xlu0.b32.cont [11/16] %v212, 128
        %342 = vxpose.xlu0.b32.cont [12/16] %v216, 128
        %343 = vxpose.xlu0.b32.cont [13/16] %v220, 128
        %344 = vxpose.xlu0.b32.cont [14/16] %v224, 128
        %345 = vxpose.xlu0.b32.cont [15/16] %v228, 128
        %346 = vxpose.xlu0.b32.end [16/16] %v232, 128
        %v347 = vpop.trf.xlu0
        %v348 = vpop.trf.xlu0
        %v349 = vpop.trf.xlu0
        %v350 = vpop.trf.xlu0
        %v351 = vpop.trf.xlu0
        %v352 = vpop.trf.xlu0
        %v353 = vpop.trf.xlu0
        %v354 = vpop.trf.xlu0
        %v355 = vpop.trf.xlu0
        %v356 = vpop.trf.xlu0
        %v357 = vpop.trf.xlu0
        %v358 = vpop.trf.xlu0
        %v359 = vpop.trf.xlu0
        %v360 = vpop.trf.xlu0
        %v361 = vpop.trf.xlu0
        %v362 = vpop.trf.xlu0
        %363 = vxpose.xlu0.b32.start [1/16] %v173, 128
        %364 = vxpose.xlu0.b32.cont [2/16] %v177, 128
        %365 = vxpose.xlu0.b32.cont [3/16] %v181, 128
        %366 = vxpose.xlu0.b32.cont [4/16] %v185, 128
        %367 = vxpose.xlu0.b32.cont [5/16] %v189, 128
        %368 = vxpose.xlu0.b32.cont [6/16] %v193, 128
        %369 = vxpose.xlu0.b32.cont [7/16] %v197, 128
        %370 = vxpose.xlu0.b32.cont [8/16] %v201, 128
        %371 = vxpose.xlu0.b32.cont [9/16] %v205, 128
        %372 = vxpose.xlu0.b32.cont [10/16] %v209, 128
        %373 = vxpose.xlu0.b32.cont [11/16] %v213, 128
        %374 = vxpose.xlu0.b32.cont [12/16] %v217, 128
        %375 = vxpose.xlu0.b32.cont [13/16] %v221, 128
        %376 = vxpose.xlu0.b32.cont [14/16] %v225, 128
        %377 = vxpose.xlu0.b32.cont [15/16] %v229, 128
        %378 = vxpose.xlu0.b32.end [16/16] %v233, 128
        %v379 = vpop.trf.xlu0
        %v380 = vpop.trf.xlu0
        %v381 = vpop.trf.xlu0
        %v382 = vpop.trf.xlu0
        %v383 = vpop.trf.xlu0
        %v384 = vpop.trf.xlu0
        %v385 = vpop.trf.xlu0
        %v386 = vpop.trf.xlu0
        %v387 = vpop.trf.xlu0
        %v388 = vpop.trf.xlu0
        %v389 = vpop.trf.xlu0
        %v390 = vpop.trf.xlu0
        %v391 = vpop.trf.xlu0
        %v392 = vpop.trf.xlu0
        %v393 = vpop.trf.xlu0
        %v394 = vpop.trf.xlu0
        %395 = vxpose.xlu0.b32.start [1/16] %v174, 128
        %396 = vxpose.xlu0.b32.cont [2/16] %v178, 128
        %397 = vxpose.xlu0.b32.cont [3/16] %v182, 128
        %398 = vxpose.xlu0.b32.cont [4/16] %v186, 128
        %399 = vxpose.xlu0.b32.cont [5/16] %v190, 128
        %400 = vxpose.xlu0.b32.cont [6/16] %v194, 128
        %401 = vxpose.xlu0.b32.cont [7/16] %v198, 128
        %402 = vxpose.xlu0.b32.cont [8/16] %v202, 128
        %403 = vxpose.xlu0.b32.cont [9/16] %v206, 128
        %404 = vxpose.xlu0.b32.cont [10/16] %v210, 128
        %405 = vxpose.xlu0.b32.cont [11/16] %v214, 128
        %406 = vxpose.xlu0.b32.cont [12/16] %v218, 128
        %407 = vxpose.xlu0.b32.cont [13/16] %v222, 128
        %408 = vxpose.xlu0.b32.cont [14/16] %v226, 128
        %409 = vxpose.xlu0.b32.cont [15/16] %v230, 128
        %410 = vxpose.xlu0.b32.end [16/16] %v234, 128
        %v411 = vpop.trf.xlu0
        %v412 = vpop.trf.xlu0
        %v413 = vpop.trf.xlu0
        %v414 = vpop.trf.xlu0
        %v415 = vpop.trf.xlu0
        %v416 = vpop.trf.xlu0
        %v417 = vpop.trf.xlu0
        %v418 = vpop.trf.xlu0
        %v419 = vpop.trf.xlu0
        %v420 = vpop.trf.xlu0
        %v421 = vpop.trf.xlu0
        %v422 = vpop.trf.xlu0
        %v423 = vpop.trf.xlu0
        %v424 = vpop.trf.xlu0
        %v425 = vpop.trf.xlu0
        %v426 = vpop.trf.xlu0
        %427 = vxpose.xlu0.b32.start [1/16] %v235, 128
        %428 = vxpose.xlu0.b32.cont [2/16] %v239, 128
        %429 = vxpose.xlu0.b32.cont [3/16] %v243, 128
        %430 = vxpose.xlu0.b32.cont [4/16] %v247, 128
        %431 = vxpose.xlu0.b32.cont [5/16] %v251, 128
        %432 = vxpose.xlu0.b32.cont [6/16] %v255, 128
        %433 = vxpose.xlu0.b32.cont [7/16] %v259, 128
        %434 = vxpose.xlu0.b32.cont [8/16] %v263, 128
        %435 = vxpose.xlu0.b32.cont [9/16] %v267, 128
        %436 = vxpose.xlu0.b32.cont [10/16] %v271, 128
        %437 = vxpose.xlu0.b32.cont [11/16] %v275, 128
        %438 = vxpose.xlu0.b32.cont [12/16] %v279, 128
        %439 = vxpose.xlu0.b32.cont [13/16] %v283, 128
        %440 = vxpose.xlu0.b32.cont [14/16] %v287, 128
        %441 = vxpose.xlu0.b32.cont [15/16] %v291, 128
        %442 = vxpose.xlu0.b32.end [16/16] %v295, 128
        %v443 = vpop.trf.xlu0
        %v444 = vpop.trf.xlu0
        %v445 = vpop.trf.xlu0
        %v446 = vpop.trf.xlu0
        %v447 = vpop.trf.xlu0
        %v448 = vpop.trf.xlu0
        %v449 = vpop.trf.xlu0
        %v450 = vpop.trf.xlu0
        %v451 = vpop.trf.xlu0
        %v452 = vpop.trf.xlu0
        %v453 = vpop.trf.xlu0
        %v454 = vpop.trf.xlu0
        %v455 = vpop.trf.xlu0
        %v456 = vpop.trf.xlu0
        %v457 = vpop.trf.xlu0
        %v458 = vpop.trf.xlu0
        %459 = vxpose.xlu0.b32.start [1/16] %v236, 128
        %460 = vxpose.xlu0.b32.cont [2/16] %v240, 128
        %461 = vxpose.xlu0.b32.cont [3/16] %v244, 128
        %462 = vxpose.xlu0.b32.cont [4/16] %v248, 128
        %463 = vxpose.xlu0.b32.cont [5/16] %v252, 128
        %464 = vxpose.xlu0.b32.cont [6/16] %v256, 128
        %465 = vxpose.xlu0.b32.cont [7/16] %v260, 128
        %466 = vxpose.xlu0.b32.cont [8/16] %v264, 128
        %467 = vxpose.xlu0.b32.cont [9/16] %v268, 128
        %468 = vxpose.xlu0.b32.cont [10/16] %v272, 128
        %469 = vxpose.xlu0.b32.cont [11/16] %v276, 128
        %470 = vxpose.xlu0.b32.cont [12/16] %v280, 128
        %471 = vxpose.xlu0.b32.cont [13/16] %v284, 128
        %472 = vxpose.xlu0.b32.cont [14/16] %v288, 128
        %473 = vxpose.xlu0.b32.cont [15/16] %v292, 128
        %474 = vxpose.xlu0.b32.end [16/16] %v296, 128
        %v475 = vpop.trf.xlu0
        %v476 = vpop.trf.xlu0
        %v477 = vpop.trf.xlu0
        %v478 = vpop.trf.xlu0
        %v479 = vpop.trf.xlu0
        %v480 = vpop.trf.xlu0
        %v481 = vpop.trf.xlu0
        %v482 = vpop.trf.xlu0
        %v483 = vpop.trf.xlu0
        %v484 = vpop.trf.xlu0
        %v485 = vpop.trf.xlu0
        %v486 = vpop.trf.xlu0
        %v487 = vpop.trf.xlu0
        %v488 = vpop.trf.xlu0
        %v489 = vpop.trf.xlu0
        %v490 = vpop.trf.xlu0
        %491 = vxpose.xlu0.b32.start [1/16] %v237, 128
        %492 = vxpose.xlu0.b32.cont [2/16] %v241, 128
        %493 = vxpose.xlu0.b32.cont [3/16] %v245, 128
        %494 = vxpose.xlu0.b32.cont [4/16] %v249, 128
        %495 = vxpose.xlu0.b32.cont [5/16] %v253, 128
        %496 = vxpose.xlu0.b32.cont [6/16] %v257, 128
        %497 = vxpose.xlu0.b32.cont [7/16] %v261, 128
        %498 = vxpose.xlu0.b32.cont [8/16] %v265, 128
        %499 = vxpose.xlu0.b32.cont [9/16] %v269, 128
        %500 = vxpose.xlu0.b32.cont [10/16] %v273, 128
        %501 = vxpose.xlu0.b32.cont [11/16] %v277, 128
        %502 = vxpose.xlu0.b32.cont [12/16] %v281, 128
        %503 = vxpose.xlu0.b32.cont [13/16] %v285, 128
        %504 = vxpose.xlu0.b32.cont [14/16] %v289, 128
        %505 = vxpose.xlu0.b32.cont [15/16] %v293, 128
        %506 = vxpose.xlu0.b32.end [16/16] %v297, 128
        %v507 = vpop.trf.xlu0
        %v508 = vpop.trf.xlu0
        %v509 = vpop.trf.xlu0
        %v510 = vpop.trf.xlu0
        %v511 = vpop.trf.xlu0
        %v512 = vpop.trf.xlu0
        %v513 = vpop.trf.xlu0
        %v514 = vpop.trf.xlu0
        %v515 = vpop.trf.xlu0
        %v516 = vpop.trf.xlu0
        %v517 = vpop.trf.xlu0
        %v518 = vpop.trf.xlu0
        %v519 = vpop.trf.xlu0
        %v520 = vpop.trf.xlu0
        %v521 = vpop.trf.xlu0
        %v522 = vpop.trf.xlu0
        %523 = vxpose.xlu0.b32.start [1/16] %v238, 128
        %524 = vxpose.xlu0.b32.cont [2/16] %v242, 128
        %525 = vxpose.xlu0.b32.cont [3/16] %v246, 128
        %526 = vxpose.xlu0.b32.cont [4/16] %v250, 128
        %527 = vxpose.xlu0.b32.cont [5/16] %v254, 128
        %528 = vxpose.xlu0.b32.cont [6/16] %v258, 128
        %529 = vxpose.xlu0.b32.cont [7/16] %v262, 128
        %530 = vxpose.xlu0.b32.cont [8/16] %v266, 128
        %531 = vxpose.xlu0.b32.cont [9/16] %v270, 128
        %532 = vxpose.xlu0.b32.cont [10/16] %v274, 128
        %533 = vxpose.xlu0.b32.cont [11/16] %v278, 128
        %534 = vxpose.xlu0.b32.cont [12/16] %v282, 128
        %535 = vxpose.xlu0.b32.cont [13/16] %v286, 128
        %536 = vxpose.xlu0.b32.cont [14/16] %v290, 128
        %537 = vxpose.xlu0.b32.cont [15/16] %v294, 128
        %538 = vxpose.xlu0.b32.end [16/16] %v298, 128
        %v539 = vpop.trf.xlu0
        %v540 = vpop.trf.xlu0
        %v541 = vpop.trf.xlu0
        %v542 = vpop.trf.xlu0
        %v543 = vpop.trf.xlu0
        %v544 = vpop.trf.xlu0
        %v545 = vpop.trf.xlu0
        %v546 = vpop.trf.xlu0
        %v547 = vpop.trf.xlu0
        %v548 = vpop.trf.xlu0
        %v549 = vpop.trf.xlu0
        %v550 = vpop.trf.xlu0
        %v551 = vpop.trf.xlu0
        %v552 = vpop.trf.xlu0
        %v553 = vpop.trf.xlu0
        %v554 = vpop.trf.xlu0
        %555 = vst [vmem:[%s166] sm:$0xff] %v315
        %556 = vst [vmem:[%s166 + $0x8] sm:$0xff] %v443
        %557 = vst [vmem:[%s166 + $0x10] sm:$0xff] %v316
        %558 = vst [vmem:[%s166 + $0x18] sm:$0xff] %v444
        %559 = vst [vmem:[%s166 + $0x20] sm:$0xff] %v317
        %560 = vst [vmem:[%s166 + $0x28] sm:$0xff] %v445
        %561 = vst [vmem:[%s166 + $0x30] sm:$0xff] %v318
        %562 = vst [vmem:[%s166 + $0x38] sm:$0xff] %v446
        %563 = vst [vmem:[%s166 + $0x40] sm:$0xff] %v319
        %564 = vst [vmem:[%s166 + $0x48] sm:$0xff] %v447
        %565 = vst [vmem:[%s166 + $0x50] sm:$0xff] %v320
        %566 = vst [vmem:[%s166 + $0x58] sm:$0xff] %v448
        %567 = vst [vmem:[%s166 + $0x60] sm:$0xff] %v321
        %568 = vst [vmem:[%s166 + $0x68] sm:$0xff] %v449
        %569 = vst [vmem:[%s166 + $0x70] sm:$0xff] %v322
        %570 = vst [vmem:[%s166 + $0x78] sm:$0xff] %v450
        %571 = vst [vmem:[%s166 + $0x80] sm:$0xff] %v323
        %572 = vst [vmem:[%s166 + $0x88] sm:$0xff] %v451
        %573 = vst [vmem:[%s166 + $0x90] sm:$0xff] %v324
        %574 = vst [vmem:[%s166 + $0x98] sm:$0xff] %v452
        %575 = vst [vmem:[%s166 + $0xa0] sm:$0xff] %v325
        %576 = vst [vmem:[%s166 + $0xa8] sm:$0xff] %v453
        %577 = vst [vmem:[%s166 + $0xb0] sm:$0xff] %v326
        %578 = vst [vmem:[%s166 + $0xb8] sm:$0xff] %v454
        %579 = vst [vmem:[%s166 + $0xc0] sm:$0xff] %v327
        %580 = vst [vmem:[%s166 + $0xc8] sm:$0xff] %v455
        %581 = vst [vmem:[%s166 + $0xd0] sm:$0xff] %v328
        %582 = vst [vmem:[%s166 + $0xd8] sm:$0xff] %v456
        %583 = vst [vmem:[%s166 + $0xe0] sm:$0xff] %v329
        %584 = vst [vmem:[%s166 + $0xe8] sm:$0xff] %v457
        %585 = vst [vmem:[%s166 + $0xf0] sm:$0xff] %v330
        %586 = vst [vmem:[%s166 + $0xf8] sm:$0xff] %v458
        %587 = vst [vmem:[%s166 + $0x100] sm:$0xff] %v347
        %588 = vst [vmem:[%s166 + $0x108] sm:$0xff] %v475
        %589 = vst [vmem:[%s166 + $0x110] sm:$0xff] %v348
        %590 = vst [vmem:[%s166 + $0x118] sm:$0xff] %v476
        %591 = vst [vmem:[%s166 + $0x120] sm:$0xff] %v349
        %592 = vst [vmem:[%s166 + $0x128] sm:$0xff] %v477
        %593 = vst [vmem:[%s166 + $0x130] sm:$0xff] %v350
        %594 = vst [vmem:[%s166 + $0x138] sm:$0xff] %v478
        %595 = vst [vmem:[%s166 + $0x140] sm:$0xff] %v351
        %596 = vst [vmem:[%s166 + $0x148] sm:$0xff] %v479
        %597 = vst [vmem:[%s166 + $0x150] sm:$0xff] %v352
        %598 = vst [vmem:[%s166 + $0x158] sm:$0xff] %v480
        %599 = vst [vmem:[%s166 + $0x160] sm:$0xff] %v353
        %600 = vst [vmem:[%s166 + $0x168] sm:$0xff] %v481
        %601 = vst [vmem:[%s166 + $0x170] sm:$0xff] %v354
        %602 = vst [vmem:[%s166 + $0x178] sm:$0xff] %v482
        %603 = vst [vmem:[%s166 + $0x180] sm:$0xff] %v355
        %604 = vst [vmem:[%s166 + $0x188] sm:$0xff] %v483
        %605 = vst [vmem:[%s166 + $0x190] sm:$0xff] %v356
        %606 = vst [vmem:[%s166 + $0x198] sm:$0xff] %v484
        %607 = vst [vmem:[%s166 + $0x1a0] sm:$0xff] %v357
        %608 = vst [vmem:[%s166 + $0x1a8] sm:$0xff] %v485
        %609 = vst [vmem:[%s166 + $0x1b0] sm:$0xff] %v358
        %610 = vst [vmem:[%s166 + $0x1b8] sm:$0xff] %v486
        %611 = vst [vmem:[%s166 + $0x1c0] sm:$0xff] %v359
        %612 = vst [vmem:[%s166 + $0x1c8] sm:$0xff] %v487
        %613 = vst [vmem:[%s166 + $0x1d0] sm:$0xff] %v360
        %614 = vst [vmem:[%s166 + $0x1d8] sm:$0xff] %v488
        %615 = vst [vmem:[%s166 + $0x1e0] sm:$0xff] %v361
        %616 = vst [vmem:[%s166 + $0x1e8] sm:$0xff] %v489
        %617 = vst [vmem:[%s166 + $0x1f0] sm:$0xff] %v362
        %618 = vst [vmem:[%s166 + $0x1f8] sm:$0xff] %v490
        %619 = vst [vmem:[%s166 + $0x200] sm:$0xff] %v379
        %620 = vst [vmem:[%s166 + $0x208] sm:$0xff] %v507
        %621 = vst [vmem:[%s166 + $0x210] sm:$0xff] %v380
        %622 = vst [vmem:[%s166 + $0x218] sm:$0xff] %v508
        %623 = vst [vmem:[%s166 + $0x220] sm:$0xff] %v381
        %624 = vst [vmem:[%s166 + $0x228] sm:$0xff] %v509
        %625 = vst [vmem:[%s166 + $0x230] sm:$0xff] %v382
        %626 = vst [vmem:[%s166 + $0x238] sm:$0xff] %v510
        %627 = vst [vmem:[%s166 + $0x240] sm:$0xff] %v383
        %628 = vst [vmem:[%s166 + $0x248] sm:$0xff] %v511
        %629 = vst [vmem:[%s166 + $0x250] sm:$0xff] %v384
        %630 = vst [vmem:[%s166 + $0x258] sm:$0xff] %v512
        %631 = vst [vmem:[%s166 + $0x260] sm:$0xff] %v385
        %632 = vst [vmem:[%s166 + $0x268] sm:$0xff] %v513
        %633 = vst [vmem:[%s166 + $0x270] sm:$0xff] %v386
        %634 = vst [vmem:[%s166 + $0x278] sm:$0xff] %v514
        %635 = vst [vmem:[%s166 + $0x280] sm:$0xff] %v387
        %636 = vst [vmem:[%s166 + $0x288] sm:$0xff] %v515
        %637 = vst [vmem:[%s166 + $0x290] sm:$0xff] %v388
        %638 = vst [vmem:[%s166 + $0x298] sm:$0xff] %v516
        %639 = vst [vmem:[%s166 + $0x2a0] sm:$0xff] %v389
        %640 = vst [vmem:[%s166 + $0x2a8] sm:$0xff] %v517
        %641 = vst [vmem:[%s166 + $0x2b0] sm:$0xff] %v390
        %642 = vst [vmem:[%s166 + $0x2b8] sm:$0xff] %v518
        %643 = vst [vmem:[%s166 + $0x2c0] sm:$0xff] %v391
        %644 = vst [vmem:[%s166 + $0x2c8] sm:$0xff] %v519
        %645 = vst [vmem:[%s166 + $0x2d0] sm:$0xff] %v392
        %646 = vst [vmem:[%s166 + $0x2d8] sm:$0xff] %v520
        %647 = vst [vmem:[%s166 + $0x2e0] sm:$0xff] %v393
        %648 = vst [vmem:[%s166 + $0x2e8] sm:$0xff] %v521
        %649 = vst [vmem:[%s166 + $0x2f0] sm:$0xff] %v394
        %650 = vst [vmem:[%s166 + $0x2f8] sm:$0xff] %v522
        %651 = vst [vmem:[%s166 + $0x300] sm:$0xff] %v411
        %652 = vst [vmem:[%s166 + $0x308] sm:$0xff] %v539
        %653 = vst [vmem:[%s166 + $0x310] sm:$0xff] %v412
        %654 = vst [vmem:[%s166 + $0x318] sm:$0xff] %v540
        %655 = vst [vmem:[%s166 + $0x320] sm:$0xff] %v413
        %656 = vst [vmem:[%s166 + $0x328] sm:$0xff] %v541
        %657 = vst [vmem:[%s166 + $0x330] sm:$0xff] %v414
        %658 = vst [vmem:[%s166 + $0x338] sm:$0xff] %v542
        %659 = vst [vmem:[%s166 + $0x340] sm:$0xff] %v415
        %660 = vst [vmem:[%s166 + $0x348] sm:$0xff] %v543
        %661 = vst [vmem:[%s166 + $0x350] sm:$0xff] %v416
        %662 = vst [vmem:[%s166 + $0x358] sm:$0xff] %v544
        %663 = vst [vmem:[%s166 + $0x360] sm:$0xff] %v417
        %664 = vst [vmem:[%s166 + $0x368] sm:$0xff] %v545
        %665 = vst [vmem:[%s166 + $0x370] sm:$0xff] %v418
        %666 = vst [vmem:[%s166 + $0x378] sm:$0xff] %v546
        %667 = vst [vmem:[%s166 + $0x380] sm:$0xff] %v419
        %668 = vst [vmem:[%s166 + $0x388] sm:$0xff] %v547
        %669 = vst [vmem:[%s166 + $0x390] sm:$0xff] %v420
        %670 = vst [vmem:[%s166 + $0x398] sm:$0xff] %v548
        %671 = vst [vmem:[%s166 + $0x3a0] sm:$0xff] %v421
        %672 = vst [vmem:[%s166 + $0x3a8] sm:$0xff] %v549
        %673 = vst [vmem:[%s166 + $0x3b0] sm:$0xff] %v422
        %674 = vst [vmem:[%s166 + $0x3b8] sm:$0xff] %v550
        %675 = vst [vmem:[%s166 + $0x3c0] sm:$0xff] %v423
        %676 = vst [vmem:[%s166 + $0x3c8] sm:$0xff] %v551
        %677 = vst [vmem:[%s166 + $0x3d0] sm:$0xff] %v424
        %678 = vst [vmem:[%s166 + $0x3d8] sm:$0xff] %v552
        %679 = vst [vmem:[%s166 + $0x3e0] sm:$0xff] %v425
        %680 = vst [vmem:[%s166 + $0x3e8] sm:$0xff] %v553
        %681 = vst [vmem:[%s166 + $0x3f0] sm:$0xff] %v426
        %682 = vst [vmem:[%s166 + $0x3f8] sm:$0xff] %v554
        %s683 = sand.u32 %s79, 1
        %s684 = scalar_lea.sflag [#allocation4], %s683
        %s685 = sand.u32 %s79, 1
        %s686 = smul.addr %s685, 1024
        %s687 = scalar_lea.vmem [#allocation5], %s686
        // Predicated region
        $region29: #{tpu_custom_call.1} parent=23 // pred_check
          %p688 = pneg %p89
        $region30: #{tpu_custom_call.1} parent=23 // pred_check_branch
          %690 = sbr.rel (%p688) target = $region32
        $region31: #{tpu_custom_call.1} parent=23 // pred_region
          %s691 = smul.u32 64, %s24
          %s692 = smul.u32 2, %s25
          %s694 = ssub.s32 16384, 16384
          %695 = vsyncadd %s684, %s694
          %s696 = smul.addr %s691, 2
          %s697 = sadd.s32 %s692, %s696
          %s698 = smul.addr %s23, 256
          %s699 = sadd.s32 %s697, %s698
          %s700 = smul.addr %s699, 128
          %s701 = scalar_lea.hbm %s1, %s700
          %s702 = sshll.u32 %s687, 4
          %s703 = int_to_ptr.vmem [resolvable:$true] %s702
          %708 = dma.vmem_to_hbm [thread:$0]  %s703, 16384, %s701, %s684, 256, 256, 16
        $region32: #{tpu_custom_call.1} parent=23 // pred_fallthru
          _
      $region24: #{tpu_custom_call.1} parent=5 // pred_fallthru
        _
      %p709 = scmp.le.s32.totalorder 2, %s13
      // Predicated region
      $region33: #{tpu_custom_call.1} parent=5 // pred_check
        %p710 = pneg %p709
      $region34: #{tpu_custom_call.1} parent=5 // pred_check_branch
        %712 = sbr.rel (%p710) target = $region36
      $region35: #{tpu_custom_call.1} parent=5 // pred_region
        %s713 = ssub.s32 %s13, 2
        // Predicated region
        $region37: #{tpu_custom_call.1} parent=35 // pred_check
          %p714 = pneg %p95
        $region38: #{tpu_custom_call.1} parent=35 // pred_check_branch
          %716 = sbr.rel (%p714) target = $region40
        $region39: #{tpu_custom_call.1} parent=35 // pred_region
          %s717 = sand.u32 %s80, 1
          %s718 = scalar_lea.sflag [#allocation4], %s717
          %s719 = sand.u32 %s80, 1
          %s720 = smul.addr %s719, 1024
          %s721 = scalar_lea.vmem [#allocation5], %s720
          %722 = dma.done %s718, 16384
        $region40: #{tpu_custom_call.1} parent=35 // pred_fallthru
          _
      $region36: #{tpu_custom_call.1} parent=5 // pred_fallthru
        _
    $region6: #{tpu_custom_call.1} parent=1 // loop_footer
      %s17 = sadd.s32 1, %s13
    $region7: #{tpu_custom_call.1} parent=1 // loop_footer_branch
      %12 = sbr.rel target = $region3
    $region8: #{tpu_custom_call.1} parent=1 // loop_exit
      _
    %723 = vsyncpa [#allocation3], 1
    %s724 = scalar_lea.sflag [#allocation3], 1
    %725 = vsyncpa %s724, 1
    %726 = vsyncpa [#allocation4], 1
    %s727 = scalar_lea.sflag [#allocation4], 1
    %728 = vsyncpa %s727, 1

</llo_original>
